<compile_context>
chip_gen: v7x
topology: tpu7x:2x2x1
jax: 0.10.0
libtpu: 0.0.40
codegen_flags: <defaults>
</compile_context>

<pallas_src>
import functools

import jax
import jax.numpy as jnp
from jax.experimental import pallas as pl
from jax.experimental.pallas import tpu as pltpu


def _decoder_kernel(seq_len, hidden_dim,
                    z_ref, wih_ref, whh_ref, b_ref, wblk_ref, bout_ref, y_ref):
    H = hidden_dim
    S = seq_len
    TB = z_ref.shape[0]          # batch tile

    # The latent is repeated across every timestep (torch `x.repeat(...)`), so the
    # input-projection part of every LSTM gate is identical for all steps: compute once.
    # bf16 operands on the MXU, f32 accumulation; bias stays f32.
    gx = jnp.dot(z_ref[...].astype(jnp.bfloat16), wih_ref[...],
                 preferred_element_type=jnp.float32) + b_ref[...]        # (TB, 4H) f32

    # Hoist weight loads out of the recurrence.
    whh = whh_ref[...]                                                   # (H, 4H) bf16

    # Recurrent state stays in vregs for the whole (serial) recurrence.
    h = jnp.zeros((TB, H), jnp.float32)
    c = jnp.zeros((TB, H), jnp.float32)
    hs = []

    # TODO(synk): for very long seq_len switch to lax.fori_loop + a chunked grid axis;
    # this fully-unrolled form targets small static seq_len.
    for _ in range(S):
        gates = gx + jnp.dot(h.astype(jnp.bfloat16), whh,
                             preferred_element_type=jnp.float32)         # (TB, 4H) f32
        # Gate columns were repacked to [i|f|o|g] and the i/f/o columns pre-scaled by 0.5,
        # so sigmoid(x) = 0.5*tanh(x/2)+0.5 becomes ONE full-width tanh per step (single
        # contiguous EUP sweep over all 4H lanes) plus a cheap VPU affine.
        tg = jnp.tanh(gates)
        i_g = 0.5 * tg[:, 0 * H:1 * H] + 0.5
        f_g = 0.5 * tg[:, 1 * H:2 * H] + 0.5
        o_g = 0.5 * tg[:, 2 * H:3 * H] + 0.5
        g_g = tg[:, 3 * H:4 * H]
        c = f_g * c + i_g * g_g
        h = o_g * jnp.tanh(c)
        hs.append(h)

    # Output projection: one matmul after the loop (off the serial chain) against a
    # block-diagonal (S*H, S*F) weight, so the result is already in the (TB, S*F) output
    # layout, followed by a single full-block store.
    h_cat = jnp.concatenate(hs, axis=1).astype(jnp.bfloat16)            # (TB, S*H)
    y = jnp.dot(h_cat, wblk_ref[...],
                preferred_element_type=jnp.float32) + bout_ref[...]     # (TB, S*F)
    y_ref[...] = y.astype(y_ref.dtype)


def _repack_and_scale_gates(w, H):
    """Repack gate columns [i|f|g|o] (PyTorch) -> [i|f|o|g] and pre-scale i/f/o by 0.5
    so the kernel can implement sigmoid as 0.5*tanh(x/2)+0.5 with a single tanh."""
    return jnp.concatenate(
        [0.5 * w[..., 0:2 * H], 0.5 * w[..., 3 * H:4 * H], w[..., 2 * H:3 * H]], axis=-1)


def _round_up(x, m):
    return ((x + m - 1) // m) * m


def decoder_forward(z, w_ih, w_hh, b, w_out, b_out, *, seq_len, max_batch_tile=256):
    """Decode B independent latents. For B == 1 this matches torch Decoder.forward exactly."""
    assert seq_len >= 1, "seq_len must be >= 1"
    B, D = z.shape
    H = w_hh.shape[0]
    F = w_out.shape[1]
    S = seq_len

    # Wrapper-side (one-time) parameter prep: gate repack + sigmoid pre-scale, bf16 cast,
    # block-diagonal output projection so the kernel does ONE post-loop projection matmul.
    w_ih_r = _repack_and_scale_gates(w_ih, H).astype(jnp.bfloat16)       # (D, 4H)
    w_hh_r = _repack_and_scale_gates(w_hh, H).astype(jnp.bfloat16)       # (H, 4H)
    b_r = _repack_and_scale_gates(b, H).astype(jnp.float32)              # (1, 4H)
    w_blk = jnp.kron(jnp.eye(S, dtype=w_out.dtype), w_out).astype(jnp.bfloat16)  # (S*H, S*F)
    b_out_t = jnp.tile(b_out, (1, S)).astype(jnp.float32)                # (1, S*F)

    # Batch tiling: don't pad a small B up to the cap (single grid point, no megacore
    # overhead); for large B use full tiles and a "parallel" grid (v7x splits across TCs).
    B8 = _round_up(B, 8)
    if B8 <= max_batch_tile:
        TB, Bp = B8, B8
    else:
        TB = max_batch_tile
        Bp = _round_up(B8, TB)
    if Bp != B:
        z = jnp.pad(z, ((0, Bp - B), (0, 0)))

    kernel = functools.partial(_decoder_kernel, S, H)

    flops = int(Bp * (2 * D * 4 * H
                      + S * (2 * H * 4 * H + 12 * H)
                      + 2 * (S * H) * (S * F)))
    transcendentals = int(Bp * S * 5 * H)
    bytes_accessed = int(4 * (Bp * D + 4 * H + S * F + Bp * S * F)
                         + 2 * (D * 4 * H + H * 4 * H + S * H * S * F))

    y2d = pl.pallas_call(
        kernel,
        out_shape=jax.ShapeDtypeStruct((Bp, S * F), jnp.float32),
        grid=(Bp // TB,),
        in_specs=[
            pl.BlockSpec((TB, D), lambda i: (i, 0)),            # z        (f32, per batch tile)
            pl.BlockSpec((D, 4 * H), lambda i: (0, 0)),         # w_ih     (bf16)
            pl.BlockSpec((H, 4 * H), lambda i: (0, 0)),         # w_hh     (bf16)
            pl.BlockSpec((1, 4 * H), lambda i: (0, 0)),         # b        (f32)
            pl.BlockSpec((S * H, S * F), lambda i: (0, 0)),     # w_blk    (bf16, block-diag)
            pl.BlockSpec((1, S * F), lambda i: (0, 0)),         # b_out    (f32, tiled)
        ],
        out_specs=pl.BlockSpec((TB, S * F), lambda i: (i, 0)),
        compiler_params=pltpu.CompilerParams(
            dimension_semantics=("parallel",)),
        cost_estimate=pl.CostEstimate(
            flops=flops,
            transcendentals=transcendentals,
            bytes_accessed=bytes_accessed),
    )(z, w_ih_r, w_hh_r, b_r, w_blk, b_out_t)

    return y2d[:B].reshape(B, S, F)


def decoder_reference(z, w_ih, w_hh, b, w_out, b_out, *, seq_len):
    """Pure-JAX f32 reference (standard PyTorch gate order [i|f|g|o]) for validation."""
    H = w_hh.shape[0]
    B = z.shape[0]
    h = jnp.zeros((B, H), jnp.float32)
    c = jnp.zeros((B, H), jnp.float32)
    gx = z @ w_ih + b
    ys = []
    for _ in range(seq_len):
        gates = gx + h @ w_hh
        i = jax.nn.sigmoid(gates[:, :H])
        f = jax.nn.sigmoid(gates[:, H:2 * H])
        g = jnp.tanh(gates[:, 2 * H:3 * H])
        o = jax.nn.sigmoid(gates[:, 3 * H:])
        c = f * c + i * g
        h = o * jnp.tanh(c)
        ys.append(h @ w_out + b_out)
    return jnp.stack(ys, axis=1)   # (B, S, F)


if __name__ == "__main__":
    # Small, module-consistent shapes.
    n_features = 1              # torch forward's reshape requires n_features == 1
    seq_len = 8
    input_dim = 16
    hidden_dim = 2 * input_dim  # 32 (matches Decoder.__init__)
    batch = 16                  # number of independent latents decoded in one call

    key = jax.random.PRNGKey(0)
    k_z, k_wih, k_whh, k_bih, k_bhh, k_wo, k_bo = jax.random.split(key, 7)

    # Deterministic synthetic parameters (PyTorch-style uniform(-1/sqrt(H), 1/sqrt(H))).
    s = 1.0 / jnp.sqrt(hidden_dim)
    w_ih = jax.random.uniform(k_wih, (input_dim, 4 * hidden_dim), jnp.float32, -s, s)
    w_hh = jax.random.uniform(k_whh, (hidden_dim, 4 * hidden_dim), jnp.float32, -s, s)
    b_ih = jax.random.uniform(k_bih, (1, 4 * hidden_dim), jnp.float32, -s, s)
    b_hh = jax.random.uniform(k_bhh, (1, 4 * hidden_dim), jnp.float32, -s, s)
    b = b_ih + b_hh
    w_out = jax.random.uniform(k_wo, (hidden_dim, n_features), jnp.float32, -s, s)
    b_out = jax.random.uniform(k_bo, (1, n_features), jnp.float32, -s, s)

    # Batch of independent latents; each row is the torch module's (1, input_dim) input.
    z = jax.random.normal(k_z, (batch, input_dim), jnp.float32)

    y = decoder_forward(z, w_ih, w_hh, b, w_out, b_out, seq_len=seq_len)
    y = jax.block_until_ready(y)

    y_ref = decoder_reference(z, w_ih, w_hh, b, w_out, b_out, seq_len=seq_len)
    assert y.shape == (batch, seq_len, n_features)
    # bf16 MXU operands (f32 accumulate / f32 state) -> loosened tolerance vs f32 reference.
    assert jnp.allclose(y, y_ref, atol=3e-2, rtol=3e-2), "mismatch vs pure-JAX reference"

    # Single-latent case (exactly the torch Decoder.forward semantics).
    y1 = decoder_forward(z[:1], w_ih, w_hh, b, w_out, b_out, seq_len=seq_len)
    y1 = jax.block_until_ready(y1)
    assert y1.shape == (1, seq_len, n_features)
    assert jnp.allclose(y1[0], y_ref[0], atol=3e-2, rtol=3e-2), "mismatch (B=1 case)"

    print("KERNEL_OK")
</pallas_src>

<mosaic_0001>
module attributes {stable_mosaic.version = 11 : i64} {
  func.func @_decoder_kernel(%arg0: i32, %arg1: memref<16x16xf32, #tpu.memory_space<vmem>>, %arg2: memref<16x128xbf16, #tpu.memory_space<vmem>>, %arg3: memref<32x128xbf16, #tpu.memory_space<vmem>>, %arg4: memref<1x128xf32, #tpu.memory_space<vmem>>, %arg5: memref<256x8xbf16, #tpu.memory_space<vmem>>, %arg6: memref<1x8xf32, #tpu.memory_space<vmem>>, %arg7: memref<16x8xf32, #tpu.memory_space<vmem>>) attributes {dimension_semantics = [#tpu.dimension_semantics<parallel>], iteration_bounds = array<i64: 1>, scalar_prefetch = 0 : i64, scratch_operands = 0 : i64, tpu.core_type = #tpu.core_type<tc>, window_params = [{transform_indices = @transform_0, window_bounds = array<i64: 16, 16>}, {pipeline_mode = #tpu.pipeline_mode<synchronous>, transform_indices = @transform_1, window_bounds = array<i64: 16, 128>}, {pipeline_mode = #tpu.pipeline_mode<synchronous>, transform_indices = @transform_2, window_bounds = array<i64: 32, 128>}, {pipeline_mode = #tpu.pipeline_mode<synchronous>, transform_indices = @transform_3, window_bounds = array<i64: 1, 128>}, {pipeline_mode = #tpu.pipeline_mode<synchronous>, transform_indices = @transform_4, window_bounds = array<i64: 256, 8>}, {pipeline_mode = #tpu.pipeline_mode<synchronous>, transform_indices = @transform_5, window_bounds = array<i64: 1, 8>}, {transform_indices = @transform_6, window_bounds = array<i64: 16, 8>}]} {
    %c0 = arith.constant 0 : index
    %c0_0 = arith.constant 0 : index
    %0 = vector.load %arg1[%c0, %c0_0] : memref<16x16xf32, #tpu.memory_space<vmem>>, vector<16x16xf32>
    %1 = arith.truncf %0 : vector<16x16xf32> to vector<16x16xbf16>
    %c0_1 = arith.constant 0 : index
    %c0_2 = arith.constant 0 : index
    %2 = vector.load %arg2[%c0_1, %c0_2] : memref<16x128xbf16, #tpu.memory_space<vmem>>, vector<16x128xbf16>
    %cst = arith.constant dense<0.000000e+00> : vector<16x128xf32>
    %3 = tpu.matmul %1, %2, %cst {dimension_numbers = #tpu.dot_dimension_numbers<[1], [0], [0], [1], [0, 0, 1, 1], [], []>} : vector<16x16xbf16>, vector<16x128xbf16>, vector<16x128xf32> -> vector<16x128xf32>
    %c0_3 = arith.constant 0 : index
    %c0_4 = arith.constant 0 : index
    %4 = vector.load %arg4[%c0_3, %c0_4] : memref<1x128xf32, #tpu.memory_space<vmem>>, vector<1x128xf32>
    %5 = vector.broadcast %4 : vector<1x128xf32> to vector<16x128xf32>
    %6 = arith.addf %3, %5 : vector<16x128xf32>
    %c0_5 = arith.constant 0 : index
    %c0_6 = arith.constant 0 : index
    %7 = vector.load %arg3[%c0_5, %c0_6] : memref<32x128xbf16, #tpu.memory_space<vmem>>, vector<32x128xbf16>
    %cst_7 = arith.constant 0.000000e+00 : f32
    %8 = vector.broadcast %cst_7 : f32 to vector<16x32xf32>
    %cst_8 = arith.constant 0.000000e+00 : f32
    %9 = vector.broadcast %cst_8 : f32 to vector<16x32xf32>
    %10 = arith.truncf %8 : vector<16x32xf32> to vector<16x32xbf16>
    %cst_9 = arith.constant dense<0.000000e+00> : vector<16x128xf32>
    %11 = tpu.matmul %10, %7, %cst_9 {dimension_numbers = #tpu.dot_dimension_numbers<[1], [0], [0], [1], [0, 0, 1, 1], [], []>} : vector<16x32xbf16>, vector<32x128xbf16>, vector<16x128xf32> -> vector<16x128xf32>
    %12 = arith.addf %6, %11 : vector<16x128xf32>
    %13 = math.tanh %12 : vector<16x128xf32>
    %14 = vector.extract_strided_slice %13 {offsets = [0, 0], sizes = [16, 32], strides = [1, 1]} : vector<16x128xf32> to vector<16x32xf32>
    %cst_10 = arith.constant 5.000000e-01 : f32
    %15 = vector.broadcast %cst_10 : f32 to vector<16x32xf32>
    %16 = arith.mulf %15, %14 : vector<16x32xf32>
    %cst_11 = arith.constant 5.000000e-01 : f32
    %17 = vector.broadcast %cst_11 : f32 to vector<16x32xf32>
    %18 = arith.addf %16, %17 : vector<16x32xf32>
    %19 = vector.extract_strided_slice %13 {offsets = [0, 32], sizes = [16, 32], strides = [1, 1]} : vector<16x128xf32> to vector<16x32xf32>
    %cst_12 = arith.constant 5.000000e-01 : f32
    %20 = vector.broadcast %cst_12 : f32 to vector<16x32xf32>
    %21 = arith.mulf %20, %19 : vector<16x32xf32>
    %cst_13 = arith.constant 5.000000e-01 : f32
    %22 = vector.broadcast %cst_13 : f32 to vector<16x32xf32>
    %23 = arith.addf %21, %22 : vector<16x32xf32>
    %24 = vector.extract_strided_slice %13 {offsets = [0, 64], sizes = [16, 32], strides = [1, 1]} : vector<16x128xf32> to vector<16x32xf32>
    %cst_14 = arith.constant 5.000000e-01 : f32
    %25 = vector.broadcast %cst_14 : f32 to vector<16x32xf32>
    %26 = arith.mulf %25, %24 : vector<16x32xf32>
    %cst_15 = arith.constant 5.000000e-01 : f32
    %27 = vector.broadcast %cst_15 : f32 to vector<16x32xf32>
    %28 = arith.addf %26, %27 : vector<16x32xf32>
    %29 = vector.extract_strided_slice %13 {offsets = [0, 96], sizes = [16, 32], strides = [1, 1]} : vector<16x128xf32> to vector<16x32xf32>
    %30 = arith.mulf %23, %9 : vector<16x32xf32>
    %31 = arith.mulf %18, %29 : vector<16x32xf32>
    %32 = arith.addf %30, %31 : vector<16x32xf32>
    %33 = math.tanh %32 : vector<16x32xf32>
    %34 = arith.mulf %28, %33 : vector<16x32xf32>
    %35 = arith.truncf %34 : vector<16x32xf32> to vector<16x32xbf16>
    %cst_16 = arith.constant dense<0.000000e+00> : vector<16x128xf32>
    %36 = tpu.matmul %35, %7, %cst_16 {dimension_numbers = #tpu.dot_dimension_numbers<[1], [0], [0], [1], [0, 0, 1, 1], [], []>} : vector<16x32xbf16>, vector<32x128xbf16>, vector<16x128xf32> -> vector<16x128xf32>
    %37 = arith.addf %6, %36 : vector<16x128xf32>
    %38 = math.tanh %37 : vector<16x128xf32>
    %39 = vector.extract_strided_slice %38 {offsets = [0, 0], sizes = [16, 32], strides = [1, 1]} : vector<16x128xf32> to vector<16x32xf32>
    %cst_17 = arith.constant 5.000000e-01 : f32
    %40 = vector.broadcast %cst_17 : f32 to vector<16x32xf32>
    %41 = arith.mulf %40, %39 : vector<16x32xf32>
    %cst_18 = arith.constant 5.000000e-01 : f32
    %42 = vector.broadcast %cst_18 : f32 to vector<16x32xf32>
    %43 = arith.addf %41, %42 : vector<16x32xf32>
    %44 = vector.extract_strided_slice %38 {offsets = [0, 32], sizes = [16, 32], strides = [1, 1]} : vector<16x128xf32> to vector<16x32xf32>
    %cst_19 = arith.constant 5.000000e-01 : f32
    %45 = vector.broadcast %cst_19 : f32 to vector<16x32xf32>
    %46 = arith.mulf %45, %44 : vector<16x32xf32>
    %cst_20 = arith.constant 5.000000e-01 : f32
    %47 = vector.broadcast %cst_20 : f32 to vector<16x32xf32>
    %48 = arith.addf %46, %47 : vector<16x32xf32>
    %49 = vector.extract_strided_slice %38 {offsets = [0, 64], sizes = [16, 32], strides = [1, 1]} : vector<16x128xf32> to vector<16x32xf32>
    %cst_21 = arith.constant 5.000000e-01 : f32
    %50 = vector.broadcast %cst_21 : f32 to vector<16x32xf32>
    %51 = arith.mulf %50, %49 : vector<16x32xf32>
    %cst_22 = arith.constant 5.000000e-01 : f32
    %52 = vector.broadcast %cst_22 : f32 to vector<16x32xf32>
    %53 = arith.addf %51, %52 : vector<16x32xf32>
    %54 = vector.extract_strided_slice %38 {offsets = [0, 96], sizes = [16, 32], strides = [1, 1]} : vector<16x128xf32> to vector<16x32xf32>
    %55 = arith.mulf %48, %32 : vector<16x32xf32>
    %56 = arith.mulf %43, %54 : vector<16x32xf32>
    %57 = arith.addf %55, %56 : vector<16x32xf32>
    %58 = math.tanh %57 : vector<16x32xf32>
    %59 = arith.mulf %53, %58 : vector<16x32xf32>
    %60 = arith.truncf %59 : vector<16x32xf32> to vector<16x32xbf16>
    %cst_23 = arith.constant dense<0.000000e+00> : vector<16x128xf32>
    %61 = tpu.matmul %60, %7, %cst_23 {dimension_numbers = #tpu.dot_dimension_numbers<[1], [0], [0], [1], [0, 0, 1, 1], [], []>} : vector<16x32xbf16>, vector<32x128xbf16>, vector<16x128xf32> -> vector<16x128xf32>
    %62 = arith.addf %6, %61 : vector<16x128xf32>
    %63 = math.tanh %62 : vector<16x128xf32>
    %64 = vector.extract_strided_slice %63 {offsets = [0, 0], sizes = [16, 32], strides = [1, 1]} : vector<16x128xf32> to vector<16x32xf32>
    %cst_24 = arith.constant 5.000000e-01 : f32
    %65 = vector.broadcast %cst_24 : f32 to vector<16x32xf32>
    %66 = arith.mulf %65, %64 : vector<16x32xf32>
    %cst_25 = arith.constant 5.000000e-01 : f32
    %67 = vector.broadcast %cst_25 : f32 to vector<16x32xf32>
    %68 = arith.addf %66, %67 : vector<16x32xf32>
    %69 = vector.extract_strided_slice %63 {offsets = [0, 32], sizes = [16, 32], strides = [1, 1]} : vector<16x128xf32> to vector<16x32xf32>
    %cst_26 = arith.constant 5.000000e-01 : f32
    %70 = vector.broadcast %cst_26 : f32 to vector<16x32xf32>
    %71 = arith.mulf %70, %69 : vector<16x32xf32>
    %cst_27 = arith.constant 5.000000e-01 : f32
    %72 = vector.broadcast %cst_27 : f32 to vector<16x32xf32>
    %73 = arith.addf %71, %72 : vector<16x32xf32>
    %74 = vector.extract_strided_slice %63 {offsets = [0, 64], sizes = [16, 32], strides = [1, 1]} : vector<16x128xf32> to vector<16x32xf32>
    %cst_28 = arith.constant 5.000000e-01 : f32
    %75 = vector.broadcast %cst_28 : f32 to vector<16x32xf32>
    %76 = arith.mulf %75, %74 : vector<16x32xf32>
    %cst_29 = arith.constant 5.000000e-01 : f32
    %77 = vector.broadcast %cst_29 : f32 to vector<16x32xf32>
    %78 = arith.addf %76, %77 : vector<16x32xf32>
    %79 = vector.extract_strided_slice %63 {offsets = [0, 96], sizes = [16, 32], strides = [1, 1]} : vector<16x128xf32> to vector<16x32xf32>
    %80 = arith.mulf %73, %57 : vector<16x32xf32>
    %81 = arith.mulf %68, %79 : vector<16x32xf32>
    %82 = arith.addf %80, %81 : vector<16x32xf32>
    %83 = math.tanh %82 : vector<16x32xf32>
    %84 = arith.mulf %78, %83 : vector<16x32xf32>
    %85 = arith.truncf %84 : vector<16x32xf32> to vector<16x32xbf16>
    %cst_30 = arith.constant dense<0.000000e+00> : vector<16x128xf32>
    %86 = tpu.matmul %85, %7, %cst_30 {dimension_numbers = #tpu.dot_dimension_numbers<[1], [0], [0], [1], [0, 0, 1, 1], [], []>} : vector<16x32xbf16>, vector<32x128xbf16>, vector<16x128xf32> -> vector<16x128xf32>
    %87 = arith.addf %6, %86 : vector<16x128xf32>
    %88 = math.tanh %87 : vector<16x128xf32>
    %89 = vector.extract_strided_slice %88 {offsets = [0, 0], sizes = [16, 32], strides = [1, 1]} : vector<16x128xf32> to vector<16x32xf32>
    %cst_31 = arith.constant 5.000000e-01 : f32
    %90 = vector.broadcast %cst_31 : f32 to vector<16x32xf32>
    %91 = arith.mulf %90, %89 : vector<16x32xf32>
    %cst_32 = arith.constant 5.000000e-01 : f32
    %92 = vector.broadcast %cst_32 : f32 to vector<16x32xf32>
    %93 = arith.addf %91, %92 : vector<16x32xf32>
    %94 = vector.extract_strided_slice %88 {offsets = [0, 32], sizes = [16, 32], strides = [1, 1]} : vector<16x128xf32> to vector<16x32xf32>
    %cst_33 = arith.constant 5.000000e-01 : f32
    %95 = vector.broadcast %cst_33 : f32 to vector<16x32xf32>
    %96 = arith.mulf %95, %94 : vector<16x32xf32>
    %cst_34 = arith.constant 5.000000e-01 : f32
    %97 = vector.broadcast %cst_34 : f32 to vector<16x32xf32>
    %98 = arith.addf %96, %97 : vector<16x32xf32>
    %99 = vector.extract_strided_slice %88 {offsets = [0, 64], sizes = [16, 32], strides = [1, 1]} : vector<16x128xf32> to vector<16x32xf32>
    %cst_35 = arith.constant 5.000000e-01 : f32
    %100 = vector.broadcast %cst_35 : f32 to vector<16x32xf32>
    %101 = arith.mulf %100, %99 : vector<16x32xf32>
    %cst_36 = arith.constant 5.000000e-01 : f32
    %102 = vector.broadcast %cst_36 : f32 to vector<16x32xf32>
    %103 = arith.addf %101, %102 : vector<16x32xf32>
    %104 = vector.extract_strided_slice %88 {offsets = [0, 96], sizes = [16, 32], strides = [1, 1]} : vector<16x128xf32> to vector<16x32xf32>
    %105 = arith.mulf %98, %82 : vector<16x32xf32>
    %106 = arith.mulf %93, %104 : vector<16x32xf32>
    %107 = arith.addf %105, %106 : vector<16x32xf32>
    %108 = math.tanh %107 : vector<16x32xf32>
    %109 = arith.mulf %103, %108 : vector<16x32xf32>
    %110 = arith.truncf %109 : vector<16x32xf32> to vector<16x32xbf16>
    %cst_37 = arith.constant dense<0.000000e+00> : vector<16x128xf32>
    %111 = tpu.matmul %110, %7, %cst_37 {dimension_numbers = #tpu.dot_dimension_numbers<[1], [0], [0], [1], [0, 0, 1, 1], [], []>} : vector<16x32xbf16>, vector<32x128xbf16>, vector<16x128xf32> -> vector<16x128xf32>
    %112 = arith.addf %6, %111 : vector<16x128xf32>
    %113 = math.tanh %112 : vector<16x128xf32>
    %114 = vector.extract_strided_slice %113 {offsets = [0, 0], sizes = [16, 32], strides = [1, 1]} : vector<16x128xf32> to vector<16x32xf32>
    %cst_38 = arith.constant 5.000000e-01 : f32
    %115 = vector.broadcast %cst_38 : f32 to vector<16x32xf32>
    %116 = arith.mulf %115, %114 : vector<16x32xf32>
    %cst_39 = arith.constant 5.000000e-01 : f32
    %117 = vector.broadcast %cst_39 : f32 to vector<16x32xf32>
    %118 = arith.addf %116, %117 : vector<16x32xf32>
    %119 = vector.extract_strided_slice %113 {offsets = [0, 32], sizes = [16, 32], strides = [1, 1]} : vector<16x128xf32> to vector<16x32xf32>
    %cst_40 = arith.constant 5.000000e-01 : f32
    %120 = vector.broadcast %cst_40 : f32 to vector<16x32xf32>
    %121 = arith.mulf %120, %119 : vector<16x32xf32>
    %cst_41 = arith.constant 5.000000e-01 : f32
    %122 = vector.broadcast %cst_41 : f32 to vector<16x32xf32>
    %123 = arith.addf %121, %122 : vector<16x32xf32>
    %124 = vector.extract_strided_slice %113 {offsets = [0, 64], sizes = [16, 32], strides = [1, 1]} : vector<16x128xf32> to vector<16x32xf32>
    %cst_42 = arith.constant 5.000000e-01 : f32
    %125 = vector.broadcast %cst_42 : f32 to vector<16x32xf32>
    %126 = arith.mulf %125, %124 : vector<16x32xf32>
    %cst_43 = arith.constant 5.000000e-01 : f32
    %127 = vector.broadcast %cst_43 : f32 to vector<16x32xf32>
    %128 = arith.addf %126, %127 : vector<16x32xf32>
    %129 = vector.extract_strided_slice %113 {offsets = [0, 96], sizes = [16, 32], strides = [1, 1]} : vector<16x128xf32> to vector<16x32xf32>
    %130 = arith.mulf %123, %107 : vector<16x32xf32>
    %131 = arith.mulf %118, %129 : vector<16x32xf32>
    %132 = arith.addf %130, %131 : vector<16x32xf32>
    %133 = math.tanh %132 : vector<16x32xf32>
    %134 = arith.mulf %128, %133 : vector<16x32xf32>
    %135 = arith.truncf %134 : vector<16x32xf32> to vector<16x32xbf16>
    %cst_44 = arith.constant dense<0.000000e+00> : vector<16x128xf32>
    %136 = tpu.matmul %135, %7, %cst_44 {dimension_numbers = #tpu.dot_dimension_numbers<[1], [0], [0], [1], [0, 0, 1, 1], [], []>} : vector<16x32xbf16>, vector<32x128xbf16>, vector<16x128xf32> -> vector<16x128xf32>
    %137 = arith.addf %6, %136 : vector<16x128xf32>
    %138 = math.tanh %137 : vector<16x128xf32>
    %139 = vector.extract_strided_slice %138 {offsets = [0, 0], sizes = [16, 32], strides = [1, 1]} : vector<16x128xf32> to vector<16x32xf32>
    %cst_45 = arith.constant 5.000000e-01 : f32
    %140 = vector.broadcast %cst_45 : f32 to vector<16x32xf32>
    %141 = arith.mulf %140, %139 : vector<16x32xf32>
    %cst_46 = arith.constant 5.000000e-01 : f32
    %142 = vector.broadcast %cst_46 : f32 to vector<16x32xf32>
    %143 = arith.addf %141, %142 : vector<16x32xf32>
    %144 = vector.extract_strided_slice %138 {offsets = [0, 32], sizes = [16, 32], strides = [1, 1]} : vector<16x128xf32> to vector<16x32xf32>
    %cst_47 = arith.constant 5.000000e-01 : f32
    %145 = vector.broadcast %cst_47 : f32 to vector<16x32xf32>
    %146 = arith.mulf %145, %144 : vector<16x32xf32>
    %cst_48 = arith.constant 5.000000e-01 : f32
    %147 = vector.broadcast %cst_48 : f32 to vector<16x32xf32>
    %148 = arith.addf %146, %147 : vector<16x32xf32>
    %149 = vector.extract_strided_slice %138 {offsets = [0, 64], sizes = [16, 32], strides = [1, 1]} : vector<16x128xf32> to vector<16x32xf32>
    %cst_49 = arith.constant 5.000000e-01 : f32
    %150 = vector.broadcast %cst_49 : f32 to vector<16x32xf32>
    %151 = arith.mulf %150, %149 : vector<16x32xf32>
    %cst_50 = arith.constant 5.000000e-01 : f32
    %152 = vector.broadcast %cst_50 : f32 to vector<16x32xf32>
    %153 = arith.addf %151, %152 : vector<16x32xf32>
    %154 = vector.extract_strided_slice %138 {offsets = [0, 96], sizes = [16, 32], strides = [1, 1]} : vector<16x128xf32> to vector<16x32xf32>
    %155 = arith.mulf %148, %132 : vector<16x32xf32>
    %156 = arith.mulf %143, %154 : vector<16x32xf32>
    %157 = arith.addf %155, %156 : vector<16x32xf32>
    %158 = math.tanh %157 : vector<16x32xf32>
    %159 = arith.mulf %153, %158 : vector<16x32xf32>
    %160 = arith.truncf %159 : vector<16x32xf32> to vector<16x32xbf16>
    %cst_51 = arith.constant dense<0.000000e+00> : vector<16x128xf32>
    %161 = tpu.matmul %160, %7, %cst_51 {dimension_numbers = #tpu.dot_dimension_numbers<[1], [0], [0], [1], [0, 0, 1, 1], [], []>} : vector<16x32xbf16>, vector<32x128xbf16>, vector<16x128xf32> -> vector<16x128xf32>
    %162 = arith.addf %6, %161 : vector<16x128xf32>
    %163 = math.tanh %162 : vector<16x128xf32>
    %164 = vector.extract_strided_slice %163 {offsets = [0, 0], sizes = [16, 32], strides = [1, 1]} : vector<16x128xf32> to vector<16x32xf32>
    %cst_52 = arith.constant 5.000000e-01 : f32
    %165 = vector.broadcast %cst_52 : f32 to vector<16x32xf32>
    %166 = arith.mulf %165, %164 : vector<16x32xf32>
    %cst_53 = arith.constant 5.000000e-01 : f32
    %167 = vector.broadcast %cst_53 : f32 to vector<16x32xf32>
    %168 = arith.addf %166, %167 : vector<16x32xf32>
    %169 = vector.extract_strided_slice %163 {offsets = [0, 32], sizes = [16, 32], strides = [1, 1]} : vector<16x128xf32> to vector<16x32xf32>
    %cst_54 = arith.constant 5.000000e-01 : f32
    %170 = vector.broadcast %cst_54 : f32 to vector<16x32xf32>
    %171 = arith.mulf %170, %169 : vector<16x32xf32>
    %cst_55 = arith.constant 5.000000e-01 : f32
    %172 = vector.broadcast %cst_55 : f32 to vector<16x32xf32>
    %173 = arith.addf %171, %172 : vector<16x32xf32>
    %174 = vector.extract_strided_slice %163 {offsets = [0, 64], sizes = [16, 32], strides = [1, 1]} : vector<16x128xf32> to vector<16x32xf32>
    %cst_56 = arith.constant 5.000000e-01 : f32
    %175 = vector.broadcast %cst_56 : f32 to vector<16x32xf32>
    %176 = arith.mulf %175, %174 : vector<16x32xf32>
    %cst_57 = arith.constant 5.000000e-01 : f32
    %177 = vector.broadcast %cst_57 : f32 to vector<16x32xf32>
    %178 = arith.addf %176, %177 : vector<16x32xf32>
    %179 = vector.extract_strided_slice %163 {offsets = [0, 96], sizes = [16, 32], strides = [1, 1]} : vector<16x128xf32> to vector<16x32xf32>
    %180 = arith.mulf %173, %157 : vector<16x32xf32>
    %181 = arith.mulf %168, %179 : vector<16x32xf32>
    %182 = arith.addf %180, %181 : vector<16x32xf32>
    %183 = math.tanh %182 : vector<16x32xf32>
    %184 = arith.mulf %178, %183 : vector<16x32xf32>
    %185 = arith.truncf %184 : vector<16x32xf32> to vector<16x32xbf16>
    %cst_58 = arith.constant dense<0.000000e+00> : vector<16x128xf32>
    %186 = tpu.matmul %185, %7, %cst_58 {dimension_numbers = #tpu.dot_dimension_numbers<[1], [0], [0], [1], [0, 0, 1, 1], [], []>} : vector<16x32xbf16>, vector<32x128xbf16>, vector<16x128xf32> -> vector<16x128xf32>
    %187 = arith.addf %6, %186 : vector<16x128xf32>
    %188 = math.tanh %187 : vector<16x128xf32>
    %189 = vector.extract_strided_slice %188 {offsets = [0, 0], sizes = [16, 32], strides = [1, 1]} : vector<16x128xf32> to vector<16x32xf32>
    %cst_59 = arith.constant 5.000000e-01 : f32
    %190 = vector.broadcast %cst_59 : f32 to vector<16x32xf32>
    %191 = arith.mulf %190, %189 : vector<16x32xf32>
    %cst_60 = arith.constant 5.000000e-01 : f32
    %192 = vector.broadcast %cst_60 : f32 to vector<16x32xf32>
    %193 = arith.addf %191, %192 : vector<16x32xf32>
    %194 = vector.extract_strided_slice %188 {offsets = [0, 32], sizes = [16, 32], strides = [1, 1]} : vector<16x128xf32> to vector<16x32xf32>
    %cst_61 = arith.constant 5.000000e-01 : f32
    %195 = vector.broadcast %cst_61 : f32 to vector<16x32xf32>
    %196 = arith.mulf %195, %194 : vector<16x32xf32>
    %cst_62 = arith.constant 5.000000e-01 : f32
    %197 = vector.broadcast %cst_62 : f32 to vector<16x32xf32>
    %198 = arith.addf %196, %197 : vector<16x32xf32>
    %199 = vector.extract_strided_slice %188 {offsets = [0, 64], sizes = [16, 32], strides = [1, 1]} : vector<16x128xf32> to vector<16x32xf32>
    %cst_63 = arith.constant 5.000000e-01 : f32
    %200 = vector.broadcast %cst_63 : f32 to vector<16x32xf32>
    %201 = arith.mulf %200, %199 : vector<16x32xf32>
    %cst_64 = arith.constant 5.000000e-01 : f32
    %202 = vector.broadcast %cst_64 : f32 to vector<16x32xf32>
    %203 = arith.addf %201, %202 : vector<16x32xf32>
    %204 = vector.extract_strided_slice %188 {offsets = [0, 96], sizes = [16, 32], strides = [1, 1]} : vector<16x128xf32> to vector<16x32xf32>
    %205 = arith.mulf %198, %182 : vector<16x32xf32>
    %206 = arith.mulf %193, %204 : vector<16x32xf32>
    %207 = arith.addf %205, %206 : vector<16x32xf32>
    %208 = math.tanh %207 : vector<16x32xf32>
    %209 = arith.mulf %203, %208 : vector<16x32xf32>
    %210 = tpu.concatenate %34, %59, %84, %109, %134, %159, %184, %209 in 1 : vector<16x32xf32>, vector<16x32xf32>, vector<16x32xf32>, vector<16x32xf32>, vector<16x32xf32>, vector<16x32xf32>, vector<16x32xf32>, vector<16x32xf32> -> vector<16x256xf32>
    %211 = arith.truncf %210 : vector<16x256xf32> to vector<16x256xbf16>
    %c0_65 = arith.constant 0 : index
    %c0_66 = arith.constant 0 : index
    %212 = vector.load %arg5[%c0_65, %c0_66] : memref<256x8xbf16, #tpu.memory_space<vmem>>, vector<256x8xbf16>
    %cst_67 = arith.constant dense<0.000000e+00> : vector<16x8xf32>
    %213 = tpu.matmul %211, %212, %cst_67 {dimension_numbers = #tpu.dot_dimension_numbers<[1], [0], [0], [1], [0, 0, 1, 1], [], []>} : vector<16x256xbf16>, vector<256x8xbf16>, vector<16x8xf32> -> vector<16x8xf32>
    %c0_68 = arith.constant 0 : index
    %c0_69 = arith.constant 0 : index
    %214 = vector.load %arg6[%c0_68, %c0_69] : memref<1x8xf32, #tpu.memory_space<vmem>>, vector<1x8xf32>
    %215 = vector.broadcast %214 : vector<1x8xf32> to vector<16x8xf32>
    %216 = arith.addf %213, %215 : vector<16x8xf32>
    %c0_70 = arith.constant 0 : index
    %c0_71 = arith.constant 0 : index
    %217 = vector.load %arg7[%c0_70, %c0_71] : memref<16x8xf32, #tpu.memory_space<vmem>>, vector<16x8xf32>
    tpu.vector_store %arg7[%c0_70, %c0_71], %216 {strides = array<i32>} : memref<16x8xf32, #tpu.memory_space<vmem>>, vector<16x8xf32>,
    return
  }
  func.func @transform_0(%arg0: i32) -> (i32, i32) {
    %c0_i32 = arith.constant 0 : i32
    %c0_i32_0 = arith.constant 0 : i32
    return %arg0, %c0_i32 : i32, i32
  }
  func.func @transform_1(%arg0: i32) -> (i32, i32) {
    %c0_i32 = arith.constant 0 : i32
    %c0_i32_0 = arith.constant 0 : i32
    %c0_i32_1 = arith.constant 0 : i32
    return %c0_i32, %c0_i32_0 : i32, i32
  }
  func.func @transform_2(%arg0: i32) -> (i32, i32) {
    %c0_i32 = arith.constant 0 : i32
    %c0_i32_0 = arith.constant 0 : i32
    %c0_i32_1 = arith.constant 0 : i32
    return %c0_i32, %c0_i32_0 : i32, i32
  }
  func.func @transform_3(%arg0: i32) -> (i32, i32) {
    %c0_i32 = arith.constant 0 : i32
    %c0_i32_0 = arith.constant 0 : i32
    %c0_i32_1 = arith.constant 0 : i32
    return %c0_i32, %c0_i32_0 : i32, i32
  }
  func.func @transform_4(%arg0: i32) -> (i32, i32) {
    %c0_i32 = arith.constant 0 : i32
    %c0_i32_0 = arith.constant 0 : i32
    %c0_i32_1 = arith.constant 0 : i32
    return %c0_i32, %c0_i32_0 : i32, i32
  }
  func.func @transform_5(%arg0: i32) -> (i32, i32) {
    %c0_i32 = arith.constant 0 : i32
    %c0_i32_0 = arith.constant 0 : i32
    %c0_i32_1 = arith.constant 0 : i32
    return %c0_i32, %c0_i32_0 : i32, i32
  }
  func.func @transform_6(%arg0: i32) -> (i32, i32) {
    %c0_i32 = arith.constant 0 : i32
    %c0_i32_0 = arith.constant 0 : i32
    return %arg0, %c0_i32 : i32, i32
  }
}

</mosaic_0001>

<llo_original>
// kernel: tpu_custom_call.1
$region0: #{tpu_custom_call.1}
  #allocation0 [shape = 'u32[]', space=smem, size = 0x4, offset = 0x4, fixed_abs, tag = 'smem constant byte address 0x4 - core index']
  #allocation1 [shape = 'u32[144,128]{1,0:T(1,128)}', space=vmem, size = 0x12000, scoped, tag = 'internal scratch']
  %s0 = inlined_call_operand.vmem [shape: f32[16,16], index: 0, kind: input, shape index: {}]
  %s1 = inlined_call_operand.vmem [shape: bf16[16,128], index: 1, kind: input, shape index: {}]
  %s2 = inlined_call_operand.vmem [shape: bf16[32,128], index: 2, kind: input, shape index: {}]
  %s3 = inlined_call_operand.vmem [shape: f32[1,128], index: 3, kind: input, shape index: {}]
  %s4 = inlined_call_operand.vmem [shape: bf16[256,8], index: 4, kind: input, shape index: {}]
  %s5 = inlined_call_operand.vmem [shape: f32[1,8], index: 5, kind: input, shape index: {}]
  %s6 = inlined_call_operand.vmem [shape: f32[16,8], index: 6, kind: output, shape index: {}]
  %s7 = sld [smem:[#allocation0]]
  $region34: #{tpu_custom_call.1} parent=0
    _
  %s9 = ssub.s32 1, %s7
  %s10 = scalar_select 0, %s9, %s7
  // Predicated region
  $region2: #{tpu_custom_call.1} parent=0 // pred_check
    _
  $region3: #{tpu_custom_call.1} parent=0 // pred_check_branch
    %12 = sbr.rel (0) target = $region5
  $region4: #{tpu_custom_call.1} parent=0 // pred_region
    _
  $region5: #{tpu_custom_call.1} parent=0 // pred_fallthru
    _
  // Predicated region
  $region6: #{tpu_custom_call.1} parent=0 // pred_check
    _
  $region7: #{tpu_custom_call.1} parent=0 // pred_check_branch
    %14 = sbr.rel (0) target = $region9
  $region8: #{tpu_custom_call.1} parent=0 // pred_region
    _
  $region9: #{tpu_custom_call.1} parent=0 // pred_fallthru
    _
  // Predicated region
  $region10: #{tpu_custom_call.1} parent=0 // pred_check
    _
  $region11: #{tpu_custom_call.1} parent=0 // pred_check_branch
    %16 = sbr.rel (0) target = $region13
  $region12: #{tpu_custom_call.1} parent=0 // pred_region
    _
  $region13: #{tpu_custom_call.1} parent=0 // pred_fallthru
    _
  // Predicated region
  $region14: #{tpu_custom_call.1} parent=0 // pred_check
    _
  $region15: #{tpu_custom_call.1} parent=0 // pred_check_branch
    %18 = sbr.rel (0) target = $region17
  $region16: #{tpu_custom_call.1} parent=0 // pred_region
    _
  $region17: #{tpu_custom_call.1} parent=0 // pred_fallthru
    _
  // Predicated region
  $region18: #{tpu_custom_call.1} parent=0 // pred_check
    _
  $region19: #{tpu_custom_call.1} parent=0 // pred_check_branch
    %20 = sbr.rel (0) target = $region21
  $region20: #{tpu_custom_call.1} parent=0 // pred_region
    _
  $region21: #{tpu_custom_call.1} parent=0 // pred_fallthru
    _
  // Predicated region
  $region22: #{tpu_custom_call.1} parent=0 // pred_check
    _
  $region23: #{tpu_custom_call.1} parent=0 // pred_check_branch
    %22 = sbr.rel (0) target = $region25
  $region24: #{tpu_custom_call.1} parent=0 // pred_region
    _
  $region25: #{tpu_custom_call.1} parent=0 // pred_fallthru
    _
  %v24 = vld [vmem:[%s0] sm:$0xff]
  %v25 = vld [vmem:[%s0 + $0x8] sm:$0xff]
  %v26 = vpack.c.bf16 %v25, %v24
  %v27 = vld [vmem:[%s1] sm:$0xf]
  %v28 = vld [vmem:[%s1 + $0x4] sm:$0xf]
  %v29 = vld [vmem:[%s3] sm:$0x1]
  %v31 = vlaneseq
  %v32 = vshrl.u32 %v31, 7
  %v33 = vsub.s32 0, %v32
  %v34 = vrot.slane %v29, %v33
  %v38 = vunpack.c.l.b16 %v27
  %v39 = vunpack.c.l.b16 %v28
  %v40 = vpack.c.b16 %v39, %v38
  %vm42 = vcmask 130048
  %v44 = vsel %vm42, %v26, 0
  %46 = vmatprep.subr.bf16.mxu0 0
  %47 = vmatpush1.bf16.msra.mxu0 %v40
  %48 = vmatprep.subr.bf16.mxu0 0
  %49 = vmatpush1.bf16.msra.mxu0 0
  %50 = vmatprep.subr.bf16.mxu0 0
  %51 = vmatpush1.bf16.msra.mxu0 0
  %52 = vmatprep.subr.bf16.mxu0 0
  %53 = vmatpush1.bf16.msra.mxu0 0
  %54 = vmatprep.subr.bf16.mxu0 0
  %55 = vmatpush1.bf16.msra.mxu0 0
  %56 = vmatprep.subr.bf16.mxu0 0
  %57 = vmatpush1.bf16.msra.mxu0 0
  %58 = vmatprep.subr.bf16.mxu0 0
  %59 = vmatpush1.bf16.msra.mxu0 0
  %60 = vmatprep.subr.bf16.mxu0 0
  %61 = vmatpush1.bf16.msra.mxu0 0
  %62 = vmatprep.subr.bf16.mxu0 0
  %63 = vmatpush1.bf16.msra.mxu0 0
  %64 = vmatprep.subr.bf16.mxu0 0
  %65 = vmatpush1.bf16.msra.mxu0 0
  %66 = vmatprep.subr.bf16.mxu0 0
  %67 = vmatpush1.bf16.msra.mxu0 0
  %68 = vmatprep.subr.bf16.mxu0 0
  %69 = vmatpush1.bf16.msra.mxu0 0
  %70 = vmatprep.subr.bf16.mxu0 0
  %71 = vmatpush1.bf16.msra.mxu0 0
  %72 = vmatprep.subr.bf16.mxu0 0
  %73 = vmatpush1.bf16.msra.mxu0 0
  %74 = vmatprep.subr.bf16.mxu0 0
  %75 = vmatpush1.bf16.msra.mxu0 0
  %76 = vmatprep.subr.bf16.mxu0 0
  %77 = vmatpush1.bf16.msra.mxu0 0
  %78 = vmatprep.mubr.bf16.mxu0 0
  %79 = vmatmul.mubr.bf16.gmra.mrb[0].mxu0 %v44
  %v80 = vpop.f32.mrb[0].mxu0
  %v81 = vadd.f32 %v34, %v80
  %v82 = vpop.f32.mrb[0].mxu0
  %v83 = vpop.f32.mrb[0].mxu0
  %v84 = vadd.f32 %v34, %v83
  %v85 = vpop.f32.mrb[0].mxu0
  %86 = vdwg.mxu0
  %v87 = vld [vmem:[%s2] sm:$0xf]
  %v88 = vld [vmem:[%s2 + $0x4] sm:$0xf]
  %v89 = vld [vmem:[%s2 + $0x8] sm:$0xf]
  %v90 = vld [vmem:[%s2 + $0xc] sm:$0xf]
  %v95 = vunpack.c.l.b16 %v87
  %v96 = vunpack.c.l.b16 %v88
  %v97 = vunpack.c.l.b16 %v89
  %v98 = vunpack.c.l.b16 %v90
  %v99 = vpack.c.b16 %v96, %v95
  %v100 = vpack.c.b16 %v98, %v97
  %vm103 = vcmask 261120
  %v105 = vsel %vm103, 0, 0
  %107 = vmatprep.subr.bf16.mxu0 0
  %108 = vmatpush1.bf16.msra.mxu0 %v99
  %109 = vmatprep.subr.bf16.mxu0 0
  %110 = vmatpush1.bf16.msra.mxu0 %v100
  %111 = vmatprep.subr.bf16.mxu0 0
  %112 = vmatpush1.bf16.msra.mxu0 0
  %113 = vmatprep.subr.bf16.mxu0 0
  %114 = vmatpush1.bf16.msra.mxu0 0
  %115 = vmatprep.subr.bf16.mxu0 0
  %116 = vmatpush1.bf16.msra.mxu0 0
  %117 = vmatprep.subr.bf16.mxu0 0
  %118 = vmatpush1.bf16.msra.mxu0 0
  %119 = vmatprep.subr.bf16.mxu0 0
  %120 = vmatpush1.bf16.msra.mxu0 0
  %121 = vmatprep.subr.bf16.mxu0 0
  %122 = vmatpush1.bf16.msra.mxu0 0
  %123 = vmatprep.subr.bf16.mxu0 0
  %124 = vmatpush1.bf16.msra.mxu0 0
  %125 = vmatprep.subr.bf16.mxu0 0
  %126 = vmatpush1.bf16.msra.mxu0 0
  %127 = vmatprep.subr.bf16.mxu0 0
  %128 = vmatpush1.bf16.msra.mxu0 0
  %129 = vmatprep.subr.bf16.mxu0 0
  %130 = vmatpush1.bf16.msra.mxu0 0
  %131 = vmatprep.subr.bf16.mxu0 0
  %132 = vmatpush1.bf16.msra.mxu0 0
  %133 = vmatprep.subr.bf16.mxu0 0
  %134 = vmatpush1.bf16.msra.mxu0 0
  %135 = vmatprep.subr.bf16.mxu0 0
  %136 = vmatpush1.bf16.msra.mxu0 0
  %137 = vmatprep.subr.bf16.mxu0 0
  %138 = vmatpush1.bf16.msra.mxu0 0
  %139 = vmatprep.mubr.bf16.mxu0 0
  %140 = vmatmul.mubr.bf16.gmra.mrb[0].mxu0 %v105
  %v141 = vpop.f32.mrb[0].mxu0
  %v142 = vadd.f32 0.0, %v141
  %v143 = vpop.f32.mrb[0].mxu0
  %v144 = vpop.f32.mrb[0].mxu0
  %v145 = vadd.f32 0.0, %v144
  %v146 = vpop.f32.mrb[0].mxu0
  %147 = vdwg.mxu0
  %v148 = vadd.f32 %v81, %v142
  %v149 = vadd.f32 %v84, %v145
  %v150 = vtanh.pop %v148
  %v151 = vtanh.pop %v149
  %v152 = vmul.f32 %v150, 0.5
  %v153 = vmul.f32 %v151, 0.5
  %v154 = vadd.f32 %v152, 0.5
  %v155 = vadd.f32 %v153, 0.5
  %v156 = vmul.f32 %v154, 0.0
  %v157 = vmul.f32 %v155, 0.0
  %160 = vrot.lane.b32.xlu0 %v150, 32
  %v161 = vpop.permute.xlu0 %160
  %162 = vrot.lane.b32.xlu0 %v151, 32
  %v163 = vpop.permute.xlu0 %162
  %v166 = vmul.f32 %v154, %v161
  %v167 = vmul.f32 %v155, %v163
  %170 = vrot.lane.b32.xlu0 %v166, 32
  %v171 = vpop.permute.xlu0 %170
  %172 = vrot.lane.b32.xlu0 %v167, 32
  %v173 = vpop.permute.xlu0 %172
  %v176 = vadd.f32 %v156, %v171
  %v177 = vadd.f32 %v157, %v173
  %v178 = vtanh.pop %v176
  %v179 = vtanh.pop %v177
  %182 = vrot.lane.b32.xlu0 %v178, 32
  %v183 = vpop.permute.xlu0 %182
  %184 = vrot.lane.b32.xlu0 %v179, 32
  %v185 = vpop.permute.xlu0 %184
  %v188 = vmul.f32 %v154, %v183
  %v189 = vmul.f32 %v155, %v185
  %v190 = vpack.c.bf16 %v189, %v188
  %192 = vrot.lane.b32.xlu0 %v190, 64
  %v193 = vpop.permute.xlu0 %192
  %v195 = vsel %vm103, %v193, 0
  %197 = vmatprep.subr.bf16.mxu0 0
  %198 = vmatpush1.bf16.msra.mxu0 %v99
  %199 = vmatprep.subr.bf16.mxu0 0
  %200 = vmatpush1.bf16.msra.mxu0 %v100
  %201 = vmatprep.subr.bf16.mxu0 0
  %202 = vmatpush1.bf16.msra.mxu0 0
  %203 = vmatprep.subr.bf16.mxu0 0
  %204 = vmatpush1.bf16.msra.mxu0 0
  %205 = vmatprep.subr.bf16.mxu0 0
  %206 = vmatpush1.bf16.msra.mxu0 0
  %207 = vmatprep.subr.bf16.mxu0 0
  %208 = vmatpush1.bf16.msra.mxu0 0
  %209 = vmatprep.subr.bf16.mxu0 0
  %210 = vmatpush1.bf16.msra.mxu0 0
  %211 = vmatprep.subr.bf16.mxu0 0
  %212 = vmatpush1.bf16.msra.mxu0 0
  %213 = vmatprep.subr.bf16.mxu0 0
  %214 = vmatpush1.bf16.msra.mxu0 0
  %215 = vmatprep.subr.bf16.mxu0 0
  %216 = vmatpush1.bf16.msra.mxu0 0
  %217 = vmatprep.subr.bf16.mxu0 0
  %218 = vmatpush1.bf16.msra.mxu0 0
  %219 = vmatprep.subr.bf16.mxu0 0
  %220 = vmatpush1.bf16.msra.mxu0 0
  %221 = vmatprep.subr.bf16.mxu0 0
  %222 = vmatpush1.bf16.msra.mxu0 0
  %223 = vmatprep.subr.bf16.mxu0 0
  %224 = vmatpush1.bf16.msra.mxu0 0
  %225 = vmatprep.subr.bf16.mxu0 0
  %226 = vmatpush1.bf16.msra.mxu0 0
  %227 = vmatprep.subr.bf16.mxu0 0
  %228 = vmatpush1.bf16.msra.mxu0 0
  %229 = vmatprep.mubr.bf16.mxu0 0
  %230 = vmatmul.mubr.bf16.gmra.mrb[0].mxu0 %v195
  %v231 = vpop.f32.mrb[0].mxu0
  %v232 = vadd.f32 0.0, %v231
  %v233 = vpop.f32.mrb[0].mxu0
  %v234 = vpop.f32.mrb[0].mxu0
  %v235 = vadd.f32 0.0, %v234
  %v236 = vpop.f32.mrb[0].mxu0
  %237 = vdwg.mxu0
  %v238 = vadd.f32 %v81, %v232
  %v239 = vadd.f32 %v84, %v235
  %v240 = vtanh.pop %v238
  %v241 = vtanh.pop %v239
  %v242 = vmul.f32 %v240, 0.5
  %v243 = vmul.f32 %v241, 0.5
  %v244 = vadd.f32 %v242, 0.5
  %v245 = vadd.f32 %v243, 0.5
  %v246 = vmul.f32 %v244, %v176
  %v247 = vmul.f32 %v245, %v177
  %250 = vrot.lane.b32.xlu0 %v240, 32
  %v251 = vpop.permute.xlu0 %250
  %252 = vrot.lane.b32.xlu0 %v241, 32
  %v253 = vpop.permute.xlu0 %252
  %v256 = vmul.f32 %v244, %v251
  %v257 = vmul.f32 %v245, %v253
  %260 = vrot.lane.b32.xlu0 %v256, 32
  %v261 = vpop.permute.xlu0 %260
  %262 = vrot.lane.b32.xlu0 %v257, 32
  %v263 = vpop.permute.xlu0 %262
  %v266 = vadd.f32 %v246, %v261
  %v267 = vadd.f32 %v247, %v263
  %v268 = vtanh.pop %v266
  %v269 = vtanh.pop %v267
  %272 = vrot.lane.b32.xlu0 %v268, 32
  %v273 = vpop.permute.xlu0 %272
  %274 = vrot.lane.b32.xlu0 %v269, 32
  %v275 = vpop.permute.xlu0 %274
  %v278 = vmul.f32 %v244, %v273
  %v279 = vmul.f32 %v245, %v275
  %v280 = vpack.c.bf16 %v279, %v278
  %282 = vrot.lane.b32.xlu0 %v280, 64
  %v283 = vpop.permute.xlu0 %282
  %v285 = vsel %vm103, %v283, 0
  %287 = vmatprep.subr.bf16.mxu0 0
  %288 = vmatpush1.bf16.msra.mxu0 %v99
  %289 = vmatprep.subr.bf16.mxu0 0
  %290 = vmatpush1.bf16.msra.mxu0 %v100
  %291 = vmatprep.subr.bf16.mxu0 0
  %292 = vmatpush1.bf16.msra.mxu0 0
  %293 = vmatprep.subr.bf16.mxu0 0
  %294 = vmatpush1.bf16.msra.mxu0 0
  %295 = vmatprep.subr.bf16.mxu0 0
  %296 = vmatpush1.bf16.msra.mxu0 0
  %297 = vmatprep.subr.bf16.mxu0 0
  %298 = vmatpush1.bf16.msra.mxu0 0
  %299 = vmatprep.subr.bf16.mxu0 0
  %300 = vmatpush1.bf16.msra.mxu0 0
  %301 = vmatprep.subr.bf16.mxu0 0
  %302 = vmatpush1.bf16.msra.mxu0 0
  %303 = vmatprep.subr.bf16.mxu0 0
  %304 = vmatpush1.bf16.msra.mxu0 0
  %305 = vmatprep.subr.bf16.mxu0 0
  %306 = vmatpush1.bf16.msra.mxu0 0
  %307 = vmatprep.subr.bf16.mxu0 0
  %308 = vmatpush1.bf16.msra.mxu0 0
  %309 = vmatprep.subr.bf16.mxu0 0
  %310 = vmatpush1.bf16.msra.mxu0 0
  %311 = vmatprep.subr.bf16.mxu0 0
  %312 = vmatpush1.bf16.msra.mxu0 0
  %313 = vmatprep.subr.bf16.mxu0 0
  %314 = vmatpush1.bf16.msra.mxu0 0
  %315 = vmatprep.subr.bf16.mxu0 0
  %316 = vmatpush1.bf16.msra.mxu0 0
  %317 = vmatprep.subr.bf16.mxu0 0
  %318 = vmatpush1.bf16.msra.mxu0 0
  %319 = vmatprep.mubr.bf16.mxu0 0
  %320 = vmatmul.mubr.bf16.gmra.mrb[0].mxu0 %v285
  %v321 = vpop.f32.mrb[0].mxu0
  %v322 = vadd.f32 0.0, %v321
  %v323 = vpop.f32.mrb[0].mxu0
  %v324 = vpop.f32.mrb[0].mxu0
  %v325 = vadd.f32 0.0, %v324
  %v326 = vpop.f32.mrb[0].mxu0
  %327 = vdwg.mxu0
  %v328 = vadd.f32 %v81, %v322
  %v329 = vadd.f32 %v84, %v325
  %v330 = vtanh.pop %v328
  %v331 = vtanh.pop %v329
  %v332 = vmul.f32 %v330, 0.5
  %v333 = vmul.f32 %v331, 0.5
  %v334 = vadd.f32 %v332, 0.5
  %v335 = vadd.f32 %v333, 0.5
  %v336 = vmul.f32 %v334, %v266
  %v337 = vmul.f32 %v335, %v267
  %340 = vrot.lane.b32.xlu0 %v330, 32
  %v341 = vpop.permute.xlu0 %340
  %342 = vrot.lane.b32.xlu0 %v331, 32
  %v343 = vpop.permute.xlu0 %342
  %v346 = vmul.f32 %v334, %v341
  %v347 = vmul.f32 %v335, %v343
  %350 = vrot.lane.b32.xlu0 %v346, 32
  %v351 = vpop.permute.xlu0 %350
  %352 = vrot.lane.b32.xlu0 %v347, 32
  %v353 = vpop.permute.xlu0 %352
  %v356 = vadd.f32 %v336, %v351
  %v357 = vadd.f32 %v337, %v353
  %v358 = vtanh.pop %v356
  %v359 = vtanh.pop %v357
  %362 = vrot.lane.b32.xlu0 %v358, 32
  %v363 = vpop.permute.xlu0 %362
  %364 = vrot.lane.b32.xlu0 %v359, 32
  %v365 = vpop.permute.xlu0 %364
  %v368 = vmul.f32 %v334, %v363
  %v369 = vmul.f32 %v335, %v365
  %v370 = vpack.c.bf16 %v369, %v368
  %372 = vrot.lane.b32.xlu0 %v370, 64
  %v373 = vpop.permute.xlu0 %372
  %v375 = vsel %vm103, %v373, 0
  %377 = vmatprep.subr.bf16.mxu0 0
  %378 = vmatpush1.bf16.msra.mxu0 %v99
  %379 = vmatprep.subr.bf16.mxu0 0
  %380 = vmatpush1.bf16.msra.mxu0 %v100
  %381 = vmatprep.subr.bf16.mxu0 0
  %382 = vmatpush1.bf16.msra.mxu0 0
  %383 = vmatprep.subr.bf16.mxu0 0
  %384 = vmatpush1.bf16.msra.mxu0 0
  %385 = vmatprep.subr.bf16.mxu0 0
  %386 = vmatpush1.bf16.msra.mxu0 0
  %387 = vmatprep.subr.bf16.mxu0 0
  %388 = vmatpush1.bf16.msra.mxu0 0
  %389 = vmatprep.subr.bf16.mxu0 0
  %390 = vmatpush1.bf16.msra.mxu0 0
  %391 = vmatprep.subr.bf16.mxu0 0
  %392 = vmatpush1.bf16.msra.mxu0 0
  %393 = vmatprep.subr.bf16.mxu0 0
  %394 = vmatpush1.bf16.msra.mxu0 0
  %395 = vmatprep.subr.bf16.mxu0 0
  %396 = vmatpush1.bf16.msra.mxu0 0
  %397 = vmatprep.subr.bf16.mxu0 0
  %398 = vmatpush1.bf16.msra.mxu0 0
  %399 = vmatprep.subr.bf16.mxu0 0
  %400 = vmatpush1.bf16.msra.mxu0 0
  %401 = vmatprep.subr.bf16.mxu0 0
  %402 = vmatpush1.bf16.msra.mxu0 0
  %403 = vmatprep.subr.bf16.mxu0 0
  %404 = vmatpush1.bf16.msra.mxu0 0
  %405 = vmatprep.subr.bf16.mxu0 0
  %406 = vmatpush1.bf16.msra.mxu0 0
  %407 = vmatprep.subr.bf16.mxu0 0
  %408 = vmatpush1.bf16.msra.mxu0 0
  %409 = vmatprep.mubr.bf16.mxu0 0
  %410 = vmatmul.mubr.bf16.gmra.mrb[0].mxu0 %v375
  %v411 = vpop.f32.mrb[0].mxu0
  %v412 = vadd.f32 0.0, %v411
  %v413 = vpop.f32.mrb[0].mxu0
  %v414 = vpop.f32.mrb[0].mxu0
  %v415 = vadd.f32 0.0, %v414
  %v416 = vpop.f32.mrb[0].mxu0
  %417 = vdwg.mxu0
  %v418 = vadd.f32 %v81, %v412
  %v419 = vadd.f32 %v84, %v415
  %v420 = vtanh.pop %v418
  %v421 = vtanh.pop %v419
  %v422 = vmul.f32 %v420, 0.5
  %v423 = vmul.f32 %v421, 0.5
  %v424 = vadd.f32 %v422, 0.5
  %v425 = vadd.f32 %v423, 0.5
  %v426 = vmul.f32 %v424, %v356
  %v427 = vmul.f32 %v425, %v357
  %430 = vrot.lane.b32.xlu0 %v420, 32
  %v431 = vpop.permute.xlu0 %430
  %432 = vrot.lane.b32.xlu0 %v421, 32
  %v433 = vpop.permute.xlu0 %432
  %v436 = vmul.f32 %v424, %v431
  %v437 = vmul.f32 %v425, %v433
  %440 = vrot.lane.b32.xlu0 %v436, 32
  %v441 = vpop.permute.xlu0 %440
  %442 = vrot.lane.b32.xlu0 %v437, 32
  %v443 = vpop.permute.xlu0 %442
  %v446 = vadd.f32 %v426, %v441
  %v447 = vadd.f32 %v427, %v443
  %v448 = vtanh.pop %v446
  %v449 = vtanh.pop %v447
  %452 = vrot.lane.b32.xlu0 %v448, 32
  %v453 = vpop.permute.xlu0 %452
  %454 = vrot.lane.b32.xlu0 %v449, 32
  %v455 = vpop.permute.xlu0 %454
  %v458 = vmul.f32 %v424, %v453
  %v459 = vmul.f32 %v425, %v455
  %v460 = vpack.c.bf16 %v459, %v458
  %462 = vrot.lane.b32.xlu0 %v460, 64
  %v463 = vpop.permute.xlu0 %462
  %v465 = vsel %vm103, %v463, 0
  %467 = vmatprep.subr.bf16.mxu0 0
  %468 = vmatpush1.bf16.msra.mxu0 %v99
  %469 = vmatprep.subr.bf16.mxu0 0
  %470 = vmatpush1.bf16.msra.mxu0 %v100
  %471 = vmatprep.subr.bf16.mxu0 0
  %472 = vmatpush1.bf16.msra.mxu0 0
  %473 = vmatprep.subr.bf16.mxu0 0
  %474 = vmatpush1.bf16.msra.mxu0 0
  %475 = vmatprep.subr.bf16.mxu0 0
  %476 = vmatpush1.bf16.msra.mxu0 0
  %477 = vmatprep.subr.bf16.mxu0 0
  %478 = vmatpush1.bf16.msra.mxu0 0
  %479 = vmatprep.subr.bf16.mxu0 0
  %480 = vmatpush1.bf16.msra.mxu0 0
  %481 = vmatprep.subr.bf16.mxu0 0
  %482 = vmatpush1.bf16.msra.mxu0 0
  %483 = vmatprep.subr.bf16.mxu0 0
  %484 = vmatpush1.bf16.msra.mxu0 0
  %485 = vmatprep.subr.bf16.mxu0 0
  %486 = vmatpush1.bf16.msra.mxu0 0
  %487 = vmatprep.subr.bf16.mxu0 0
  %488 = vmatpush1.bf16.msra.mxu0 0
  %489 = vmatprep.subr.bf16.mxu0 0
  %490 = vmatpush1.bf16.msra.mxu0 0
  %491 = vmatprep.subr.bf16.mxu0 0
  %492 = vmatpush1.bf16.msra.mxu0 0
  %493 = vmatprep.subr.bf16.mxu0 0
  %494 = vmatpush1.bf16.msra.mxu0 0
  %495 = vmatprep.subr.bf16.mxu0 0
  %496 = vmatpush1.bf16.msra.mxu0 0
  %497 = vmatprep.subr.bf16.mxu0 0
  %498 = vmatpush1.bf16.msra.mxu0 0
  %499 = vmatprep.mubr.bf16.mxu0 0
  %500 = vmatmul.mubr.bf16.gmra.mrb[0].mxu0 %v465
  %v501 = vpop.f32.mrb[0].mxu0
  %v502 = vadd.f32 0.0, %v501
  %v503 = vpop.f32.mrb[0].mxu0
  %v504 = vpop.f32.mrb[0].mxu0
  %v505 = vadd.f32 0.0, %v504
  %v506 = vpop.f32.mrb[0].mxu0
  %507 = vdwg.mxu0
  %v508 = vadd.f32 %v81, %v502
  %v509 = vadd.f32 %v84, %v505
  %v510 = vtanh.pop %v508
  %v511 = vtanh.pop %v509
  %v512 = vmul.f32 %v510, 0.5
  %v513 = vmul.f32 %v511, 0.5
  %v514 = vadd.f32 %v512, 0.5
  %v515 = vadd.f32 %v513, 0.5
  %v516 = vmul.f32 %v514, %v446
  %v517 = vmul.f32 %v515, %v447
  %520 = vrot.lane.b32.xlu0 %v510, 32
  %v521 = vpop.permute.xlu0 %520
  %522 = vrot.lane.b32.xlu0 %v511, 32
  %v523 = vpop.permute.xlu0 %522
  %v526 = vmul.f32 %v514, %v521
  %v527 = vmul.f32 %v515, %v523
  %530 = vrot.lane.b32.xlu0 %v526, 32
  %v531 = vpop.permute.xlu0 %530
  %532 = vrot.lane.b32.xlu0 %v527, 32
  %v533 = vpop.permute.xlu0 %532
  %v536 = vadd.f32 %v516, %v531
  %v537 = vadd.f32 %v517, %v533
  %v538 = vtanh.pop %v536
  %v539 = vtanh.pop %v537
  %542 = vrot.lane.b32.xlu0 %v538, 32
  %v543 = vpop.permute.xlu0 %542
  %544 = vrot.lane.b32.xlu0 %v539, 32
  %v545 = vpop.permute.xlu0 %544
  %v548 = vmul.f32 %v514, %v543
  %v549 = vmul.f32 %v515, %v545
  %v550 = vpack.c.bf16 %v549, %v548
  %552 = vrot.lane.b32.xlu0 %v550, 64
  %v553 = vpop.permute.xlu0 %552
  %v555 = vsel %vm103, %v553, 0
  %557 = vmatprep.subr.bf16.mxu0 0
  %558 = vmatpush1.bf16.msra.mxu0 %v99
  %559 = vmatprep.subr.bf16.mxu0 0
  %560 = vmatpush1.bf16.msra.mxu0 %v100
  %561 = vmatprep.subr.bf16.mxu0 0
  %562 = vmatpush1.bf16.msra.mxu0 0
  %563 = vmatprep.subr.bf16.mxu0 0
  %564 = vmatpush1.bf16.msra.mxu0 0
  %565 = vmatprep.subr.bf16.mxu0 0
  %566 = vmatpush1.bf16.msra.mxu0 0
  %567 = vmatprep.subr.bf16.mxu0 0
  %568 = vmatpush1.bf16.msra.mxu0 0
  %569 = vmatprep.subr.bf16.mxu0 0
  %570 = vmatpush1.bf16.msra.mxu0 0
  %571 = vmatprep.subr.bf16.mxu0 0
  %572 = vmatpush1.bf16.msra.mxu0 0
  %573 = vmatprep.subr.bf16.mxu0 0
  %574 = vmatpush1.bf16.msra.mxu0 0
  %575 = vmatprep.subr.bf16.mxu0 0
  %576 = vmatpush1.bf16.msra.mxu0 0
  %577 = vmatprep.subr.bf16.mxu0 0
  %578 = vmatpush1.bf16.msra.mxu0 0
  %579 = vmatprep.subr.bf16.mxu0 0
  %580 = vmatpush1.bf16.msra.mxu0 0
  %581 = vmatprep.subr.bf16.mxu0 0
  %582 = vmatpush1.bf16.msra.mxu0 0
  %583 = vmatprep.subr.bf16.mxu0 0
  %584 = vmatpush1.bf16.msra.mxu0 0
  %585 = vmatprep.subr.bf16.mxu0 0
  %586 = vmatpush1.bf16.msra.mxu0 0
  %587 = vmatprep.subr.bf16.mxu0 0
  %588 = vmatpush1.bf16.msra.mxu0 0
  %589 = vmatprep.mubr.bf16.mxu0 0
  %590 = vmatmul.mubr.bf16.gmra.mrb[0].mxu0 %v555
  %v591 = vpop.f32.mrb[0].mxu0
  %v592 = vadd.f32 0.0, %v591
  %v593 = vpop.f32.mrb[0].mxu0
  %v594 = vpop.f32.mrb[0].mxu0
  %v595 = vadd.f32 0.0, %v594
  %v596 = vpop.f32.mrb[0].mxu0
  %597 = vdwg.mxu0
  %v598 = vadd.f32 %v81, %v592
  %v599 = vadd.f32 %v84, %v595
  %v600 = vtanh.pop %v598
  %v601 = vtanh.pop %v599
  %v602 = vmul.f32 %v600, 0.5
  %v603 = vmul.f32 %v601, 0.5
  %v604 = vadd.f32 %v602, 0.5
  %v605 = vadd.f32 %v603, 0.5
  %v606 = vmul.f32 %v604, %v536
  %v607 = vmul.f32 %v605, %v537
  %610 = vrot.lane.b32.xlu0 %v600, 32
  %v611 = vpop.permute.xlu0 %610
  %612 = vrot.lane.b32.xlu0 %v601, 32
  %v613 = vpop.permute.xlu0 %612
  %v616 = vmul.f32 %v604, %v611
  %v617 = vmul.f32 %v605, %v613
  %620 = vrot.lane.b32.xlu0 %v616, 32
  %v621 = vpop.permute.xlu0 %620
  %622 = vrot.lane.b32.xlu0 %v617, 32
  %v623 = vpop.permute.xlu0 %622
  %v626 = vadd.f32 %v606, %v621
  %v627 = vadd.f32 %v607, %v623
  %v628 = vtanh.pop %v626
  %v629 = vtanh.pop %v627
  %632 = vrot.lane.b32.xlu0 %v628, 32
  %v633 = vpop.permute.xlu0 %632
  %634 = vrot.lane.b32.xlu0 %v629, 32
  %v635 = vpop.permute.xlu0 %634
  %v638 = vmul.f32 %v604, %v633
  %v639 = vmul.f32 %v605, %v635
  %v640 = vpack.c.bf16 %v639, %v638
  %642 = vrot.lane.b32.xlu0 %v640, 64
  %v643 = vpop.permute.xlu0 %642
  %v645 = vsel %vm103, %v643, 0
  %647 = vmatprep.subr.bf16.mxu0 0
  %648 = vmatpush1.bf16.msra.mxu0 %v99
  %649 = vmatprep.subr.bf16.mxu0 0
  %650 = vmatpush1.bf16.msra.mxu0 %v100
  %651 = vmatprep.subr.bf16.mxu0 0
  %652 = vmatpush1.bf16.msra.mxu0 0
  %653 = vmatprep.subr.bf16.mxu0 0
  %654 = vmatpush1.bf16.msra.mxu0 0
  %655 = vmatprep.subr.bf16.mxu0 0
  %656 = vmatpush1.bf16.msra.mxu0 0
  %657 = vmatprep.subr.bf16.mxu0 0
  %658 = vmatpush1.bf16.msra.mxu0 0
  %659 = vmatprep.subr.bf16.mxu0 0
  %660 = vmatpush1.bf16.msra.mxu0 0
  %661 = vmatprep.subr.bf16.mxu0 0
  %662 = vmatpush1.bf16.msra.mxu0 0
  %663 = vmatprep.subr.bf16.mxu0 0
  %664 = vmatpush1.bf16.msra.mxu0 0
  %665 = vmatprep.subr.bf16.mxu0 0
  %666 = vmatpush1.bf16.msra.mxu0 0
  %667 = vmatprep.subr.bf16.mxu0 0
  %668 = vmatpush1.bf16.msra.mxu0 0
  %669 = vmatprep.subr.bf16.mxu0 0
  %670 = vmatpush1.bf16.msra.mxu0 0
  %671 = vmatprep.subr.bf16.mxu0 0
  %672 = vmatpush1.bf16.msra.mxu0 0
  %673 = vmatprep.subr.bf16.mxu0 0
  %674 = vmatpush1.bf16.msra.mxu0 0
  %675 = vmatprep.subr.bf16.mxu0 0
  %676 = vmatpush1.bf16.msra.mxu0 0
  %677 = vmatprep.subr.bf16.mxu0 0
  %678 = vmatpush1.bf16.msra.mxu0 0
  %679 = vmatprep.mubr.bf16.mxu0 0
  %680 = vmatmul.mubr.bf16.gmra.mrb[0].mxu0 %v645
  %v681 = vpop.f32.mrb[0].mxu0
  %v682 = vadd.f32 0.0, %v681
  %v683 = vpop.f32.mrb[0].mxu0
  %v684 = vpop.f32.mrb[0].mxu0
  %v685 = vadd.f32 0.0, %v684
  %v686 = vpop.f32.mrb[0].mxu0
  %687 = vdwg.mxu0
  %v688 = vadd.f32 %v81, %v682
  %v689 = vadd.f32 %v84, %v685
  %v690 = vtanh.pop %v688
  %v691 = vtanh.pop %v689
  %v692 = vmul.f32 %v690, 0.5
  %v693 = vmul.f32 %v691, 0.5
  %v694 = vadd.f32 %v692, 0.5
  %v695 = vadd.f32 %v693, 0.5
  %v696 = vmul.f32 %v694, %v626
  %v697 = vmul.f32 %v695, %v627
  %700 = vrot.lane.b32.xlu0 %v690, 32
  %v701 = vpop.permute.xlu0 %700
  %702 = vrot.lane.b32.xlu0 %v691, 32
  %v703 = vpop.permute.xlu0 %702
  %v706 = vmul.f32 %v694, %v701
  %v707 = vmul.f32 %v695, %v703
  %710 = vrot.lane.b32.xlu0 %v706, 32
  %v711 = vpop.permute.xlu0 %710
  %712 = vrot.lane.b32.xlu0 %v707, 32
  %v713 = vpop.permute.xlu0 %712
  %v716 = vadd.f32 %v696, %v711
  %v717 = vadd.f32 %v697, %v713
  %v718 = vtanh.pop %v716
  %v719 = vtanh.pop %v717
  %722 = vrot.lane.b32.xlu0 %v718, 32
  %v723 = vpop.permute.xlu0 %722
  %724 = vrot.lane.b32.xlu0 %v719, 32
  %v725 = vpop.permute.xlu0 %724
  %v728 = vmul.f32 %v694, %v723
  %v729 = vmul.f32 %v695, %v725
  %v730 = vpack.c.bf16 %v729, %v728
  %732 = vrot.lane.b32.xlu0 %v730, 64
  %v733 = vpop.permute.xlu0 %732
  %v735 = vsel %vm103, %v733, 0
  %737 = vmatprep.subr.bf16.mxu0 0
  %738 = vmatpush1.bf16.msra.mxu0 %v99
  %739 = vmatprep.subr.bf16.mxu0 0
  %740 = vmatpush1.bf16.msra.mxu0 %v100
  %741 = vmatprep.subr.bf16.mxu0 0
  %742 = vmatpush1.bf16.msra.mxu0 0
  %743 = vmatprep.subr.bf16.mxu0 0
  %744 = vmatpush1.bf16.msra.mxu0 0
  %745 = vmatprep.subr.bf16.mxu0 0
  %746 = vmatpush1.bf16.msra.mxu0 0
  %747 = vmatprep.subr.bf16.mxu0 0
  %748 = vmatpush1.bf16.msra.mxu0 0
  %749 = vmatprep.subr.bf16.mxu0 0
  %750 = vmatpush1.bf16.msra.mxu0 0
  %751 = vmatprep.subr.bf16.mxu0 0
  %752 = vmatpush1.bf16.msra.mxu0 0
  %753 = vmatprep.subr.bf16.mxu0 0
  %754 = vmatpush1.bf16.msra.mxu0 0
  %755 = vmatprep.subr.bf16.mxu0 0
  %756 = vmatpush1.bf16.msra.mxu0 0
  %757 = vmatprep.subr.bf16.mxu0 0
  %758 = vmatpush1.bf16.msra.mxu0 0
  %759 = vmatprep.subr.bf16.mxu0 0
  %760 = vmatpush1.bf16.msra.mxu0 0
  %761 = vmatprep.subr.bf16.mxu0 0
  %762 = vmatpush1.bf16.msra.mxu0 0
  %763 = vmatprep.subr.bf16.mxu0 0
  %764 = vmatpush1.bf16.msra.mxu0 0
  %765 = vmatprep.subr.bf16.mxu0 0
  %766 = vmatpush1.bf16.msra.mxu0 0
  %767 = vmatprep.subr.bf16.mxu0 0
  %768 = vmatpush1.bf16.msra.mxu0 0
  %769 = vmatprep.mubr.bf16.mxu0 0
  %770 = vmatmul.mubr.bf16.gmra.mrb[0].mxu0 %v735
  %v771 = vpop.f32.mrb[0].mxu0
  %v772 = vadd.f32 0.0, %v771
  %v773 = vpop.f32.mrb[0].mxu0
  %v774 = vpop.f32.mrb[0].mxu0
  %v775 = vadd.f32 0.0, %v774
  %v776 = vpop.f32.mrb[0].mxu0
  %777 = vdwg.mxu0
  %v778 = vadd.f32 %v81, %v772
  %v779 = vadd.f32 %v84, %v775
  %v780 = vtanh.pop %v778
  %v781 = vtanh.pop %v779
  %v782 = vmul.f32 %v780, 0.5
  %v783 = vmul.f32 %v781, 0.5
  %v784 = vadd.f32 %v782, 0.5
  %v785 = vadd.f32 %v783, 0.5
  %v786 = vmul.f32 %v784, %v716
  %v787 = vmul.f32 %v785, %v717
  %790 = vrot.lane.b32.xlu0 %v780, 32
  %v791 = vpop.permute.xlu0 %790
  %792 = vrot.lane.b32.xlu0 %v781, 32
  %v793 = vpop.permute.xlu0 %792
  %v796 = vmul.f32 %v784, %v791
  %v797 = vmul.f32 %v785, %v793
  %800 = vrot.lane.b32.xlu0 %v796, 32
  %v801 = vpop.permute.xlu0 %800
  %802 = vrot.lane.b32.xlu0 %v797, 32
  %v803 = vpop.permute.xlu0 %802
  %v806 = vadd.f32 %v786, %v801
  %v807 = vadd.f32 %v787, %v803
  %v808 = vtanh.pop %v806
  %v809 = vtanh.pop %v807
  %812 = vrot.lane.b32.xlu0 %v808, 32
  %v813 = vpop.permute.xlu0 %812
  %814 = vrot.lane.b32.xlu0 %v809, 32
  %v815 = vpop.permute.xlu0 %814
  %v818 = vmul.f32 %v784, %v813
  %v819 = vmul.f32 %v785, %v815
  %822 = vrot.lane.b32.xlu0 %v188, 64
  %v823 = vpop.permute.xlu0 %822
  %824 = vrot.lane.b32.xlu0 %v189, 64
  %v825 = vpop.permute.xlu0 %824
  %830 = vrot.lane.b32.xlu0 %v278, 96
  %v831 = vpop.permute.xlu0 %830
  %832 = vrot.lane.b32.xlu0 %v279, 96
  %v833 = vpop.permute.xlu0 %832
  %838 = vrot.lane.b32.xlu0 %v458, 32
  %v839 = vpop.permute.xlu0 %838
  %840 = vrot.lane.b32.xlu0 %v459, 32
  %v841 = vpop.permute.xlu0 %840
  %846 = vrot.lane.b32.xlu0 %v548, 64
  %v847 = vpop.permute.xlu0 %846
  %848 = vrot.lane.b32.xlu0 %v549, 64
  %v849 = vpop.permute.xlu0 %848
  %854 = vrot.lane.b32.xlu0 %v638, 96
  %v855 = vpop.permute.xlu0 %854
  %856 = vrot.lane.b32.xlu0 %v639, 96
  %v857 = vpop.permute.xlu0 %856
  %862 = vrot.lane.b32.xlu0 %v818, 32
  %v863 = vpop.permute.xlu0 %862
  %864 = vrot.lane.b32.xlu0 %v819, 32
  %v865 = vpop.permute.xlu0 %864
  %v868 = vsel %vm103, %v823, %v831
  %v869 = vsel %vm103, %v825, %v833
  %vm870 = vcmask 523264
  %v871 = vsel %vm870, %v868, %v368
  %v872 = vsel %vm870, %v869, %v369
  %vm873 = vcmask 785408
  %v874 = vsel %vm873, %v871, %v839
  %v875 = vsel %vm873, %v872, %v841
  %v876 = vsel %vm103, %v847, %v855
  %v877 = vsel %vm103, %v849, %v857
  %v878 = vsel %vm870, %v876, %v728
  %v879 = vsel %vm870, %v877, %v729
  %v880 = vsel %vm873, %v878, %v863
  %v881 = vsel %vm873, %v879, %v865
  %v882 = vpack.c.bf16 %v875, %v874
  %v883 = vpack.c.bf16 %v881, %v880
  %v884 = vld [vmem:[%s4] sm:$0xf]
  %v885 = vld [vmem:[%s4 + $0x4] sm:$0xf]
  %v886 = vld [vmem:[%s4 + $0x8] sm:$0xf]
  %v887 = vld [vmem:[%s4 + $0xc] sm:$0xf]
  %v888 = vld [vmem:[%s4 + $0x10] sm:$0xf]
  %v889 = vld [vmem:[%s4 + $0x14] sm:$0xf]
  %v890 = vld [vmem:[%s4 + $0x18] sm:$0xf]
  %v891 = vld [vmem:[%s4 + $0x1c] sm:$0xf]
  %v892 = vld [vmem:[%s4 + $0x20] sm:$0xf]
  %v893 = vld [vmem:[%s4 + $0x24] sm:$0xf]
  %v894 = vld [vmem:[%s4 + $0x28] sm:$0xf]
  %v895 = vld [vmem:[%s4 + $0x2c] sm:$0xf]
  %v896 = vld [vmem:[%s4 + $0x30] sm:$0xf]
  %v897 = vld [vmem:[%s4 + $0x34] sm:$0xf]
  %v898 = vld [vmem:[%s4 + $0x38] sm:$0xf]
  %v899 = vld [vmem:[%s4 + $0x3c] sm:$0xf]
  %v900 = vld [vmem:[%s4 + $0x40] sm:$0xf]
  %v901 = vld [vmem:[%s4 + $0x44] sm:$0xf]
  %v902 = vld [vmem:[%s4 + $0x48] sm:$0xf]
  %v903 = vld [vmem:[%s4 + $0x4c] sm:$0xf]
  %v904 = vld [vmem:[%s4 + $0x50] sm:$0xf]
  %v905 = vld [vmem:[%s4 + $0x54] sm:$0xf]
  %v906 = vld [vmem:[%s4 + $0x58] sm:$0xf]
  %v907 = vld [vmem:[%s4 + $0x5c] sm:$0xf]
  %v908 = vld [vmem:[%s4 + $0x60] sm:$0xf]
  %v909 = vld [vmem:[%s4 + $0x64] sm:$0xf]
  %v910 = vld [vmem:[%s4 + $0x68] sm:$0xf]
  %v911 = vld [vmem:[%s4 + $0x6c] sm:$0xf]
  %v912 = vld [vmem:[%s4 + $0x70] sm:$0xf]
  %v913 = vld [vmem:[%s4 + $0x74] sm:$0xf]
  %v914 = vld [vmem:[%s4 + $0x78] sm:$0xf]
  %v915 = vld [vmem:[%s4 + $0x7c] sm:$0xf]
  %v916 = vld [vmem:[%s5] sm:$0x1]
  %v918 = vlaneseq
  %v919 = vshrl.u32 %v918, 7
  %v920 = vsub.s32 0, %v919
  %v921 = vrot.slane %v916, %v920
  %v955 = vunpack.c.l.b16 %v884
  %v956 = vunpack.c.l.b16 %v885
  %v957 = vunpack.c.l.b16 %v886
  %v958 = vunpack.c.l.b16 %v887
  %v959 = vunpack.c.l.b16 %v888
  %v960 = vunpack.c.l.b16 %v889
  %v961 = vunpack.c.l.b16 %v890
  %v962 = vunpack.c.l.b16 %v891
  %v963 = vunpack.c.l.b16 %v892
  %v964 = vunpack.c.l.b16 %v893
  %v965 = vunpack.c.l.b16 %v894
  %v966 = vunpack.c.l.b16 %v895
  %v967 = vunpack.c.l.b16 %v896
  %v968 = vunpack.c.l.b16 %v897
  %v969 = vunpack.c.l.b16 %v898
  %v970 = vunpack.c.l.b16 %v899
  %v971 = vunpack.c.l.b16 %v900
  %v972 = vunpack.c.l.b16 %v901
  %v973 = vunpack.c.l.b16 %v902
  %v974 = vunpack.c.l.b16 %v903
  %v975 = vunpack.c.l.b16 %v904
  %v976 = vunpack.c.l.b16 %v905
  %v977 = vunpack.c.l.b16 %v906
  %v978 = vunpack.c.l.b16 %v907
  %v979 = vunpack.c.l.b16 %v908
  %v980 = vunpack.c.l.b16 %v909
  %v981 = vunpack.c.l.b16 %v910
  %v982 = vunpack.c.l.b16 %v911
  %v983 = vunpack.c.l.b16 %v912
  %v984 = vunpack.c.l.b16 %v913
  %v985 = vunpack.c.l.b16 %v914
  %v986 = vunpack.c.l.b16 %v915
  %v987 = vpack.c.b16 %v956, %v955
  %v988 = vpack.c.b16 %v958, %v957
  %v989 = vpack.c.b16 %v960, %v959
  %v990 = vpack.c.b16 %v962, %v961
  %v991 = vpack.c.b16 %v964, %v963
  %v992 = vpack.c.b16 %v966, %v965
  %v993 = vpack.c.b16 %v968, %v967
  %v994 = vpack.c.b16 %v970, %v969
  %v995 = vpack.c.b16 %v972, %v971
  %v996 = vpack.c.b16 %v974, %v973
  %v997 = vpack.c.b16 %v976, %v975
  %v998 = vpack.c.b16 %v978, %v977
  %v999 = vpack.c.b16 %v980, %v979
  %v1000 = vpack.c.b16 %v982, %v981
  %v1001 = vpack.c.b16 %v984, %v983
  %v1002 = vpack.c.b16 %v986, %v985
  %1019 = vmatprep.subr.bf16.mxu0 0
  %1020 = vmatpush1.bf16.msra.mxu0 %v987
  %1021 = vmatprep.subr.bf16.mxu0 0
  %1022 = vmatpush1.bf16.msra.mxu0 %v988
  %1023 = vmatprep.subr.bf16.mxu0 0
  %1024 = vmatpush1.bf16.msra.mxu0 %v989
  %1025 = vmatprep.subr.bf16.mxu0 0
  %1026 = vmatpush1.bf16.msra.mxu0 %v990
  %1027 = vmatprep.subr.bf16.mxu0 0
  %1028 = vmatpush1.bf16.msra.mxu0 %v991
  %1029 = vmatprep.subr.bf16.mxu0 0
  %1030 = vmatpush1.bf16.msra.mxu0 %v992
  %1031 = vmatprep.subr.bf16.mxu0 0
  %1032 = vmatpush1.bf16.msra.mxu0 %v993
  %1033 = vmatprep.subr.bf16.mxu0 0
  %1034 = vmatpush1.bf16.msra.mxu0 %v994
  %1035 = vmatprep.subr.bf16.mxu0 0
  %1036 = vmatpush1.bf16.msra.mxu0 %v995
  %1037 = vmatprep.subr.bf16.mxu0 0
  %1038 = vmatpush1.bf16.msra.mxu0 %v996
  %1039 = vmatprep.subr.bf16.mxu0 0
  %1040 = vmatpush1.bf16.msra.mxu0 %v997
  %1041 = vmatprep.subr.bf16.mxu0 0
  %1042 = vmatpush1.bf16.msra.mxu0 %v998
  %1043 = vmatprep.subr.bf16.mxu0 0
  %1044 = vmatpush1.bf16.msra.mxu0 %v999
  %1045 = vmatprep.subr.bf16.mxu0 0
  %1046 = vmatpush1.bf16.msra.mxu0 %v1000
  %1047 = vmatprep.subr.bf16.mxu0 0
  %1048 = vmatpush1.bf16.msra.mxu0 %v1001
  %1049 = vmatprep.subr.bf16.mxu0 0
  %1050 = vmatpush1.bf16.msra.mxu0 %v1002
  %1051 = vmatprep.mubr.bf16.mxu0 %v883
  %1052 = vmatmul.mubr.bf16.gmra.mrb[0].mxu0 %v882
  %v1053 = vpop.f32.mrb[0].mxu0
  %v1054 = vadd.f32 %v921, %v1053
  %v1055 = vpop.f32.mrb[0].mxu0
  %v1056 = vpop.f32.mrb[0].mxu0
  %v1057 = vadd.f32 %v921, %v1056
  %v1058 = vpop.f32.mrb[0].mxu0
  %1059 = vdwg.mxu0
  %vm1060 = vcmask 64512
  %1061 = vst.msk [vmem:[%s6] sm:$0xff] %vm1060, %v1054
  %1062 = vst.msk [vmem:[%s6 + $0x8] sm:$0xff] %vm1060, %v1057
  // Predicated region
  $region26: #{tpu_custom_call.1} parent=0 // pred_check
    _
  $region27: #{tpu_custom_call.1} parent=0 // pred_check_branch
    %1064 = sbr.rel (0) target = $region29
  $region28: #{tpu_custom_call.1} parent=0 // pred_region
    _
  $region29: #{tpu_custom_call.1} parent=0 // pred_fallthru
    _
  // Predicated region
  $region30: #{tpu_custom_call.1} parent=0 // pred_check
    _
  $region31: #{tpu_custom_call.1} parent=0 // pred_check_branch
    %1066 = sbr.rel (0) target = $region33
  $region32: #{tpu_custom_call.1} parent=0 // pred_region
    _
  $region33: #{tpu_custom_call.1} parent=0 // pred_fallthru
    _

</llo_original>
